<compile_context>
chip_gen: v5e
topology: v5e:2x2
jax: 0.10.0
libtpu: 0.0.40
codegen_flags: <defaults>
</compile_context>

<pallas_src>
import jax
import jax.numpy as jnp
from jax.experimental import pallas as pl
from jax.experimental.pallas import tpu as pltpu


_STREAM_BUDGET_BYTES = 4 * 1024 * 1024   # per streamed block (before multi-buffering)
_MAX_UNROLL_CHUNKS = 16                  # caps the in-kernel 128-lane fold unroll


def _round_up(x, m):
    return ((x + m - 1) // m) * m


def _vmem_capacity_bytes():
    try:
        return int(pltpu.get_tpu_info().vmem_capacity_bytes)
    except Exception:
        return 64 * 1024 * 1024          # conservative: v7x per-TensorCore VMEM


def _vmem_limit(footprint_bytes):
    cap = _vmem_capacity_bytes()
    lim = max(cap // 3, int(footprint_bytes) + (8 << 20))   # footprint + headroom
    return int(min(lim, (cap * 3) // 4))


def _pick_lane_tile(total_lanes, row_bytes, budget_bytes, max_lanes):
    """Largest multiple of 128 dividing total_lanes (itself a 128-multiple), capped by
    max_lanes and by the per-block byte budget (floor: 128 lanes)."""
    cap = (budget_bytes // max(row_bytes, 1)) // 128 * 128
    cap = max(128, min(total_lanes, max_lanes, cap))
    t = cap
    while total_lanes % t != 0:          # both multiples of 128 -> terminates (>=128)
        t -= 128
    return t


def _spec(block_shape, index_map, n_buf=2):
    """BlockSpec with optional deeper multi-buffering; degrades gracefully."""
    if n_buf > 2 and hasattr(pl, "Buffered"):
        try:
            return pl.BlockSpec(block_shape, index_map,
                                pipeline_mode=pl.Buffered(n_buf))
        except TypeError:
            pass
    return pl.BlockSpec(block_shape, index_map)


# ------------- Kernel A: streaming global sum over HW (VALU-only steady state) --


def _pool_sum_kernel(x_ref, psum_ref, acc_ref):
    # x_ref:    (N, Cin, t_hw)    current spatial chunk (t_hw % 128 == 0)
    # psum_ref: (1, N, Cin) f32   per-parallel-half raw spatial sum
    # acc_ref:  (N, Cin, 128) f32 lane-layout accumulator (no XLU in steady state)
    k = pl.program_id(1)

    @pl.when(k == 0)
    def _init():
        acc_ref[...] = jnp.zeros_like(acc_ref)

    acc = acc_ref[...]
    for c in range(x_ref.shape[-1] // 128):           # static, small unroll: pure VALU adds
        acc = acc + x_ref[:, :, c * 128:(c + 1) * 128].astype(jnp.float32)
    acc_ref[...] = acc

    @pl.when(k == pl.num_programs(1) - 1)
    def _finalize():
        # Single cross-lane (XLU) reduction per parallel half.
        psum_ref[...] = jnp.sum(acc_ref[...], axis=-1)[None, :, :]


# ------------- Micro kernel: (N,Cin)x(Cin,Cout) + folded BN + ReLU + cast -------


def _matmul_bn_relu_kernel(p_ref, w_ref, b_ref, y_ref):
    y = jnp.dot(p_ref[...], w_ref[...], preferred_element_type=jnp.float32)
    y_ref[...] = jnp.maximum(y + b_ref[...], 0.0).astype(y_ref.dtype)


# ------------- Kernel B: broadcast 1x1 activation to HxW (pure lane splat) ------


def _broadcast_kernel(y_ref, o_ref):
    # y_ref: (rows, 1) out_dtype ; o_ref: (rows, t_hw) out_dtype
    o_ref[...] = jnp.broadcast_to(y_ref[...], o_ref.shape)


# ------------- Wrapper -----------------------------------------------------------


def aspp_pooling(x, conv_w, bn_gamma, bn_beta, bn_mean, bn_var, eps=1e-5):
    """x: (N, Cin, H, W) NCHW; conv_w: (Cout, Cin, 1, 1). Returns (N, Cout, H, W)."""
    n, cin, h, w = x.shape
    cout = conv_w.shape[0]
    hw = h * w
    out_dtype = x.dtype
    x_itemsize = jnp.dtype(x.dtype).itemsize
    out_itemsize = jnp.dtype(out_dtype).itemsize

    # Fold BN scale into the (pre-transposed) conv weight; precompute folded bias.
    scale = (bn_gamma / jnp.sqrt(bn_var + eps)).astype(jnp.float32)           # (Cout,)
    w_folded = (conv_w.reshape(cout, cin).astype(jnp.float32)
                * scale[:, None]).T                                            # (Cin, Cout)
    bias = (bn_beta.astype(jnp.float32)
            - bn_mean.astype(jnp.float32) * scale).reshape(1, cout)            # (1, Cout)

    # Lane-dense view of x; zero-pad HW so every tile is a 128-lane multiple and the
    # two parallel halves are equal (zeros don't change the sum; divide by true hw).
    num_splits = 2 if _round_up(hw, 128) >= 256 else 1
    hw_pad = _round_up(hw, num_splits * 128)
    x3 = x.reshape(n, cin, hw)
    if hw_pad != hw:
        x3 = jnp.pad(x3, ((0, 0), (0, 0), (0, hw_pad - hw)))

    # ---- Kernel A: streaming spatial sum, split over `num_splits` parallel halves
    half = hw_pad // num_splits
    t_hw_a = _pick_lane_tile(half, n * cin * x_itemsize, _STREAM_BUDGET_BYTES,
                             max_lanes=_MAX_UNROLL_CHUNKS * 128)
    k_steps = half // t_hw_a
    x_block_bytes = n * cin * t_hw_a * x_itemsize
    n_buf_a = 3 if (k_steps > 2 and x_block_bytes <= _STREAM_BUDGET_BYTES) else 2
    footprint_a = n_buf_a * x_block_bytes + n * cin * 128 * 4 + 2 * n * cin * 4

    cost_a = pl.CostEstimate(
        flops=int(n * cin * hw_pad),
        transcendentals=0,
        bytes_accessed=int(x3.size * x_itemsize + num_splits * n * cin * 4),
    )

    partial = pl.pallas_call(
        _pool_sum_kernel,
        out_shape=jax.ShapeDtypeStruct((num_splits, n, cin), jnp.float32),
        grid_spec=pltpu.PrefetchScalarGridSpec(
            num_scalar_prefetch=0,
            grid=(num_splits, k_steps),
            in_specs=[_spec((n, cin, t_hw_a),
                            lambda c, k: (0, 0, c * k_steps + k),
                            n_buf=n_buf_a)],
            out_specs=pl.BlockSpec((1, n, cin), lambda c, k: (c, 0, 0)),
            scratch_shapes=[pltpu.VMEM((n, cin, 128), jnp.float32)],
        ),
        compiler_params=pltpu.CompilerParams(
            dimension_semantics=("parallel", "arbitrary"),
            vmem_limit_bytes=_vmem_limit(footprint_a),
        ),
        cost_estimate=cost_a,
    )(x3)

    # Combine per-half partial sums and take the mean (tiny, plain XLA).
    pooled = jnp.sum(partial, axis=0) * jnp.float32(1.0 / hw)                  # (N, Cin)

    # ---- Micro kernel: 1x1 conv (channel matmul) + folded BN + ReLU + cast -----
    y = pl.pallas_call(
        _matmul_bn_relu_kernel,
        out_shape=jax.ShapeDtypeStruct((n, cout), out_dtype),
    )(pooled, w_folded, bias)

    # ---- Kernel B: stream the broadcast as a lane-dense (N*Cout, HW) slab ------
    rows = n * cout
    y2 = y.reshape(rows, 1)                                                    # layout-free

    cost_b = pl.CostEstimate(
        flops=0,
        transcendentals=0,
        bytes_accessed=int(rows * out_itemsize + rows * hw * out_itemsize),
    )

    if hw % 128 == 0:
        t_hw_b = _pick_lane_tile(hw, rows * out_itemsize, _STREAM_BUDGET_BYTES,
                                 max_lanes=1 << 16)
        grid_b = (hw // t_hw_b,)
        n_buf_b = 3 if (grid_b[0] > 2
                        and rows * t_hw_b * out_itemsize <= _STREAM_BUDGET_BYTES) else 2
        in_spec_b = pl.BlockSpec((rows, 1), lambda i: (0, 0))
        out_spec_b = _spec((rows, t_hw_b), lambda i: (0, i), n_buf=n_buf_b)
        footprint_b = n_buf_b * rows * t_hw_b * out_itemsize + 2 * rows * out_itemsize
    else:
        # HW not a 128-multiple: keep the full-extent lane dim, tile rows (sublanes).
        t_rows = rows
        if rows % 8 == 0:
            cap_rows = max(8, (_STREAM_BUDGET_BYTES // max(hw * out_itemsize, 1)) // 8 * 8)
            t_rows = min(rows, cap_rows)
            while rows % t_rows != 0:
                t_rows -= 8
        grid_b = (rows // t_rows,)
        in_spec_b = pl.BlockSpec((t_rows, 1), lambda i: (i, 0))
        out_spec_b = pl.BlockSpec((t_rows, hw), lambda i: (i, 0))
        footprint_b = 2 * t_rows * hw * out_itemsize + 2 * t_rows * out_itemsize

    out2 = pl.pallas_call(
        _broadcast_kernel,
        out_shape=jax.ShapeDtypeStruct((rows, hw), out_dtype),
        grid_spec=pltpu.PrefetchScalarGridSpec(
            num_scalar_prefetch=0,
            grid=grid_b,
            in_specs=[in_spec_b],
            out_specs=out_spec_b,
        ),
        compiler_params=pltpu.CompilerParams(
            dimension_semantics=("parallel",),
            vmem_limit_bytes=_vmem_limit(footprint_b),
        ),
        cost_estimate=cost_b,
    )(y2)

    # (N*Cout, H*W) -> (N, Cout, H, W) has identical layout: reshape is free.
    return out2.reshape(n, cout, h, w)


# ------------- Pure-JAX reference --------------------------------------------------


def aspp_pooling_ref(x, conv_w, bn_gamma, bn_beta, bn_mean, bn_var, eps=1e-5):
    n, cin, h, w = x.shape
    cout = conv_w.shape[0]
    pooled = jnp.mean(x.astype(jnp.float32), axis=(2, 3))             # (N, Cin)
    y = pooled @ conv_w.reshape(cout, cin).astype(jnp.float32).T      # (N, Cout)
    y = (y - bn_mean) / jnp.sqrt(bn_var + eps) * bn_gamma + bn_beta
    y = jnp.maximum(y, 0.0)
    return jnp.broadcast_to(y[:, :, None, None], (n, cout, h, w)).astype(x.dtype)


if __name__ == "__main__":
    key = jax.random.PRNGKey(0)
    kx, kw = jax.random.split(key)

    N, Cin, Cout, H, W = 2, 4, 8, 16, 16

    x = jax.random.normal(kx, (N, Cin, H, W), dtype=jnp.float32)
    # Conv2d(in, out, 1, bias=False) weight: (Cout, Cin, 1, 1)
    conv_w = jax.random.normal(kw, (Cout, Cin, 1, 1), dtype=jnp.float32) * 0.1
    # Non-trivial (but deterministic) BatchNorm2d running stats / affine params.
    bn_gamma = jnp.linspace(0.5, 1.5, Cout, dtype=jnp.float32)
    bn_beta = jnp.linspace(-0.2, 0.2, Cout, dtype=jnp.float32)
    bn_mean = jnp.linspace(-0.1, 0.1, Cout, dtype=jnp.float32)
    bn_var = jnp.linspace(0.5, 1.5, Cout, dtype=jnp.float32)

    out = aspp_pooling(x, conv_w, bn_gamma, bn_beta, bn_mean, bn_var)
    out = jax.block_until_ready(out)

    ref = aspp_pooling_ref(x, conv_w, bn_gamma, bn_beta, bn_mean, bn_var)
    assert out.shape == (N, Cout, H, W)
    assert jnp.allclose(out, ref, atol=1e-5, rtol=1e-5)

    print("KERNEL_OK")
</pallas_src>

<mosaic_0001>
module attributes {stable_mosaic.version = 11 : i64} {
  func.func @_pool_sum_kernel(%arg0: i32, %arg1: i32, %arg2: memref<2x4x128xf32, #tpu.memory_space<vmem>>, %arg3: memref<1x2x4xf32, #tpu.memory_space<vmem>>, %arg4: memref<2x4x128xf32, #tpu.memory_space<vmem>>) attributes {dimension_semantics = [#tpu.dimension_semantics<parallel>, #tpu.dimension_semantics<arbitrary>], iteration_bounds = array<i64: 2, 1>, scalar_prefetch = 0 : i64, scratch_operands = 1 : i64, tpu.core_type = #tpu.core_type<tc>, window_params = [{transform_indices = @transform_0, window_bounds = array<i64: 2, 4, 128>}, {transform_indices = @transform_1, window_bounds = array<i64: 1, 2, 4>}]} {
    %c0_i32 = arith.constant 0 : i32
    %0 = arith.cmpi eq, %arg1, %c0_i32 : i32
    %1 = arith.extui %0 : i1 to i32
    %c0_i32_0 = arith.constant 0 : i32
    %2 = arith.cmpi ne, %1, %c0_i32_0 : i32
    scf.if %2 {
      %cst = arith.constant 0.000000e+00 : f32
      %10 = vector.broadcast %cst : f32 to vector<2x4x128xf32>
      %c0_11 = arith.constant 0 : index
      %c0_12 = arith.constant 0 : index
      %c0_13 = arith.constant 0 : index
      %11 = vector.load %arg4[%c0_11, %c0_12, %c0_13] : memref<2x4x128xf32, #tpu.memory_space<vmem>>, vector<2x4x128xf32>
      tpu.vector_store %arg4[%c0_11, %c0_12, %c0_13], %10 {strides = array<i32>} : memref<2x4x128xf32, #tpu.memory_space<vmem>>, vector<2x4x128xf32>,
    } else {
    }
    %c0 = arith.constant 0 : index
    %c0_1 = arith.constant 0 : index
    %c0_2 = arith.constant 0 : index
    %3 = vector.load %arg4[%c0, %c0_1, %c0_2] : memref<2x4x128xf32, #tpu.memory_space<vmem>>, vector<2x4x128xf32>
    %c0_3 = arith.constant 0 : index
    %c0_4 = arith.constant 0 : index
    %c0_5 = arith.constant 0 : index
    %4 = vector.load %arg2[%c0_3, %c0_4, %c0_5] : memref<2x4x128xf32, #tpu.memory_space<vmem>>, vector<2x4x128xf32>
    %5 = arith.addf %3, %4 : vector<2x4x128xf32>
    %c0_6 = arith.constant 0 : index
    %c0_7 = arith.constant 0 : index
    %c0_8 = arith.constant 0 : index
    %6 = vector.load %arg4[%c0_6, %c0_7, %c0_8] : memref<2x4x128xf32, #tpu.memory_space<vmem>>, vector<2x4x128xf32>
    tpu.vector_store %arg4[%c0_6, %c0_7, %c0_8], %5 {strides = array<i32>} : memref<2x4x128xf32, #tpu.memory_space<vmem>>, vector<2x4x128xf32>,
    %c0_i32_9 = arith.constant 0 : i32
    %7 = arith.cmpi eq, %arg1, %c0_i32_9 : i32
    %8 = arith.extui %7 : i1 to i32
    %c0_i32_10 = arith.constant 0 : i32
    %9 = arith.cmpi ne, %8, %c0_i32_10 : i32
    scf.if %9 {
      %c0_11 = arith.constant 0 : index
      %c0_12 = arith.constant 0 : index
      %c0_13 = arith.constant 0 : index
      %10 = vector.load %arg4[%c0_11, %c0_12, %c0_13] : memref<2x4x128xf32, #tpu.memory_space<vmem>>, vector<2x4x128xf32>
      %cst = arith.constant dense<0.000000e+00> : vector<2x4xf32>
      %11 = vector.multi_reduction <add>, %10, %cst [2] : vector<2x4x128xf32> to vector<2x4xf32>
      %12 = vector.shape_cast %11 : vector<2x4xf32> to vector<1x2x4xf32>
      %c0_14 = arith.constant 0 : index
      %c0_15 = arith.constant 0 : index
      %c0_16 = arith.constant 0 : index
      %13 = vector.load %arg3[%c0_14, %c0_15, %c0_16] : memref<1x2x4xf32, #tpu.memory_space<vmem>>, vector<1x2x4xf32>
      tpu.vector_store %arg3[%c0_14, %c0_15, %c0_16], %12 {strides = array<i32>} : memref<1x2x4xf32, #tpu.memory_space<vmem>>, vector<1x2x4xf32>,
    } else {
    }
    return
  }
  func.func @transform_0(%arg0: i32, %arg1: i32) -> (i32, i32, i32) {
    %c1_i32 = arith.constant 1 : i32
    %0 = arith.muli %arg0, %c1_i32 : i32
    %1 = arith.addi %0, %arg1 : i32
    %c0_i32 = arith.constant 0 : i32
    %c0_i32_0 = arith.constant 0 : i32
    %c0_i32_1 = arith.constant 0 : i32
    return %c0_i32, %c0_i32_0, %1 : i32, i32, i32
  }
  func.func @transform_1(%arg0: i32, %arg1: i32) -> (i32, i32, i32) {
    %c0_i32 = arith.constant 0 : i32
    %c0_i32_0 = arith.constant 0 : i32
    %c0_i32_1 = arith.constant 0 : i32
    return %arg0, %c0_i32, %c0_i32_0 : i32, i32, i32
  }
}

</mosaic_0001>

<llo_original>
// kernel: tpu_custom_call.1
$region0: #{tpu_custom_call.1}
  #allocation0 [shape = 'u32[]', space=smem, size = 0x4, offset = 0x4, fixed_abs, tag = 'smem constant byte address 0x4 - core index']
  #allocation1 [shape = 'u32[72,128]{1,0:T(1,128)}', space=vmem, size = 0x9000, scoped, tag = 'internal scratch']
  #allocation2 [shape = 'f32[2,4,128]{2,1,0:T(4,128)}', space=vmem, size = 0x1000, scoped, tag = 'scratch operand']
  %s0 = inlined_call_operand.hbm [shape: f32[2,4,256], index: 0, kind: input, shape index: {}]
  %s1 = inlined_call_operand.hbm [shape: f32[2,2,4], index: 1, kind: output, shape index: {}]
  %s2 = sld [smem:[#allocation0]]
  $region49: #{tpu_custom_call.1} parent=0
    _
  %s4 = ssub.s32 1, %s2
  %s5 = scalar_select 0, %s4, %s2
  $region1: #{tpu_custom_call.1} parent=0
    #allocation3 [shape = 'u8[8192]{0}', space=vmem, size = 0x2000, scoped, tag = 'input window, operand 0']
    #allocation4 [shape = 's32[2]{0}', space=sflag, size = 0x8, scoped, tag = 'scoped memory for tpu_custom_call.1']
    #allocation5 [shape = 's32[2]{0}', space=sflag, size = 0x8, scoped, tag = 'scoped memory for tpu_custom_call.1']
    #allocation6 [shape = 'u8[2048]{0}', space=vmem, size = 0x800, scoped, tag = 'output window, operand 0']
    %6 = vsyncpa [#allocation4], 0
    %s7 = scalar_lea.sflag [#allocation4], 1
    %8 = vsyncpa %s7, 0
    %9 = vsyncpa [#allocation5], 0
    %s10 = scalar_lea.sflag [#allocation5], 1
    %11 = vsyncpa %s10, 0
    loop: start=0, step=1, limit=4
    $region2: #{tpu_custom_call.1} parent=1 // loop_pre_header
      _
    $region3: #{tpu_custom_call.1} parent=1 // loop_header
      %s13 = sphi 0, %s17
      %p14 = scmp.ge.s32.totalorder %s13, 4
      %s20 = sphi 0, %s32
      %s21 = sphi 0, %s28
      %s22 = sphi 0, %s20
      %s23 = sphi 0, %s21
      %s24 = sphi 0, %s22
      %s25 = sphi 0, %s23
      %s37 = sphi 0, %s39
      %s40 = sphi 0, %s37
      %s41 = sphi 0, %s40
      %s57 = sphi 0, %s41
      %s63 = sphi 0, %s65
      %s66 = sphi 0, %s63
      %s67 = sphi 0, %s66
      %s83 = sphi 0, %s67
    $region4: #{tpu_custom_call.1} parent=1 // loop_header_branch
      %16 = sbr.rel (%p14) target = $region8
    $region5: #{tpu_custom_call.1} parent=1 // loop_body
      %s18 = ssub.s32 %s13, 1
      %s19 = ssub.s32 %s13, 2
      %s26 = sadd.s32 1, %s21
      %p27 = scmp.ge.s32.totalorder %s26, 1
      %s28 = scalar_select %p27, 0, %s26
      %s29 = sadd.s32 1, %s20
      %s30 = scalar_select %p27, %s29, %s20
      %p31 = scmp.ge.s32.totalorder %s30, 2
      %s32 = scalar_select %p31, 0, %s30
      %s33 = sadd.s32 %s20, %s21
      %s34 = sadd.s32 %s32, %s28
      %s35 = ssub.s32 %s33, %s34
      %p36 = scmp.eq.s32.totalorder %s35, 0
      %s38 = sadd.s32 %s37, 1
      %s39 = scalar_select %p36, %s37, %s38
      %p42 = pneg %p36
      %p43 = scmp.eq.s32.totalorder %s13, 1
      %p44 = por %p42, %p43
      %p45 = scmp.ne.s32.totalorder %s37, %s40
      %p46 = scmp.eq.s32.totalorder %s13, 0
      %p47 = por %p45, %p46
      %p48 = scmp.ne.s32.totalorder %s37, %s40
      %p49 = scmp.eq.s32.totalorder %s18, 1
      %p50 = por %p48, %p49
      %p51 = scmp.ne.s32.totalorder %s40, %s41
      %p52 = scmp.eq.s32.totalorder %s18, 0
      %p53 = por %p51, %p52
      %p54 = scmp.ne.s32.totalorder %s40, %s41
      %p55 = scmp.eq.s32.totalorder %s19, 1
      %p56 = por %p54, %p55
      %p58 = scmp.ne.s32.totalorder %s41, %s57
      %p59 = scmp.eq.s32.totalorder %s19, 0
      %p60 = por %p58, %p59
      %s61 = ssub.s32 %s20, %s32
      %p62 = scmp.eq.s32.totalorder %s61, 0
      %s64 = sadd.s32 %s63, 1
      %s65 = scalar_select %p62, %s63, %s64
      %p68 = pneg %p62
      %p69 = scmp.eq.s32.totalorder %s13, 1
      %p70 = por %p68, %p69
      %p71 = scmp.ne.s32.totalorder %s63, %s66
      %p72 = scmp.eq.s32.totalorder %s13, 0
      %p73 = por %p71, %p72
      %p74 = scmp.ne.s32.totalorder %s63, %s66
      %p75 = scmp.eq.s32.totalorder %s18, 1
      %p76 = por %p74, %p75
      %p77 = scmp.ne.s32.totalorder %s66, %s67
      %p78 = scmp.eq.s32.totalorder %s18, 0
      %p79 = por %p77, %p78
      %p80 = scmp.ne.s32.totalorder %s66, %s67
      %p81 = scmp.eq.s32.totalorder %s19, 1
      %p82 = por %p80, %p81
      %p84 = scmp.ne.s32.totalorder %s67, %s83
      %p85 = scmp.eq.s32.totalorder %s19, 0
      %p86 = por %p84, %p85
      %p87 = scmp.le.s32.totalorder 1, %s13
      %p88 = scmp.lt.s32.totalorder %s13, 3
      %p89 = pnand %p87, %p88
      %p90 = pneg %p89
      // Predicated region
      $region9: #{tpu_custom_call.1} parent=5 // pred_check
        _
      $region10: #{tpu_custom_call.1} parent=5 // pred_check_branch
        %92 = sbr.rel (%p89) target = $region12
      $region11: #{tpu_custom_call.1} parent=5 // pred_region
        %s93 = ssub.s32 %s13, 1
      $region12: #{tpu_custom_call.1} parent=5 // pred_fallthru
        _
      %p94 = scmp.lt.s32.totalorder %s13, 2
      // Predicated region
      $region13: #{tpu_custom_call.1} parent=5 // pred_check
        %p95 = pneg %p94
      $region14: #{tpu_custom_call.1} parent=5 // pred_check_branch
        %97 = sbr.rel (%p95) target = $region16
      $region15: #{tpu_custom_call.1} parent=5 // pred_region
        // Predicated region
        $region17: #{tpu_custom_call.1} parent=15 // pred_check
          %p98 = pneg %p47
        $region18: #{tpu_custom_call.1} parent=15 // pred_check_branch
          %100 = sbr.rel (%p98) target = $region20
        $region19: #{tpu_custom_call.1} parent=15 // pred_region
          %s101 = sand.u32 %s37, 1
          %s102 = scalar_lea.sflag [#allocation4], %s101
          %s103 = sand.u32 %s37, 1
          %s104 = smul.addr %s103, 8
          %s105 = scalar_lea.vmem [#allocation3], %s104
          %s106 = sadd.s32 %s20, %s21
          %108 = vsyncadd %s102, 0
          %s109 = smul.addr %s106, 4
          %s110 = scalar_lea.hbm %s0, %s109
          %s111 = sshll.u32 %s110, 4
          %s112 = int_to_ptr.hbm [resolvable:$true] %s111
          %s113 = sshll.u32 %s105, 4
          %s114 = int_to_ptr.vmem [resolvable:$true] %s113
          %119 = dma.hbm_to_vmem [thread:$0]  %s112, 128, %s114, %s102, 128, 64, 4
        $region20: #{tpu_custom_call.1} parent=15 // pred_fallthru
          _
      $region16: #{tpu_custom_call.1} parent=5 // pred_fallthru
        _
      %p120 = scmp.le.s32.totalorder 1, %s13
      %p121 = scmp.lt.s32.totalorder %s13, 3
      %p122 = pnand %p120, %p121
      %p123 = pneg %p122
      // Predicated region
      $region21: #{tpu_custom_call.1} parent=5 // pred_check
        _
      $region22: #{tpu_custom_call.1} parent=5 // pred_check_branch
        %125 = sbr.rel (%p122) target = $region24
      $region23: #{tpu_custom_call.1} parent=5 // pred_region
        %s126 = ssub.s32 %s13, 1
        %s127 = sand.u32 %s40, 1
        %s128 = scalar_lea.sflag [#allocation4], %s127
        %s129 = sand.u32 %s40, 1
        %s130 = smul.addr %s129, 8
        %s131 = scalar_lea.vmem [#allocation3], %s130
        // Predicated region
        $region25: #{tpu_custom_call.1} parent=23 // pred_check
          %p132 = pneg %p53
        $region26: #{tpu_custom_call.1} parent=23 // pred_check_branch
          %134 = sbr.rel (%p132) target = $region28
        $region27: #{tpu_custom_call.1} parent=23 // pred_region
          %136 = dma.done %s128, 128
        $region28: #{tpu_custom_call.1} parent=23 // pred_fallthru
          _
        %s137 = sand.u32 %s40, 1
        %s138 = scalar_lea.sflag [#allocation4], %s137
        %s139 = sand.u32 %s40, 1
        %s140 = smul.addr %s139, 8
        %s141 = scalar_lea.vmem [#allocation3], %s140
        %p142 = pneg %p53
        %p143 = pneg %p50
        %p144 = pneg %p79
        %p145 = pneg %p76
        %s146 = sand.u32 %s66, 1
        %s147 = scalar_lea.sflag [#allocation5], %s146
        %s148 = sand.u32 %s66, 1
        %s149 = smul.addr %s148, 2
        %s150 = scalar_lea.vmem [#allocation6], %s149
        %s151 = sadd.s32 %s22, %s23
        %p152 = scmp.eq.s32.totalorder %s23, 0
        // Predicated region
        $region29: #{tpu_custom_call.1} parent=23 // pred_check
          %p153 = pneg %p152
        $region30: #{tpu_custom_call.1} parent=23 // pred_check_branch
          %155 = sbr.rel (%p153) target = $region32
        $region31: #{tpu_custom_call.1} parent=23 // pred_region
          %156 = vst [vmem:[#allocation2] sm:$0xf] 0.0
          %157 = vst [vmem:[#allocation2 + $0x4] sm:$0xf] 0.0
        $region32: #{tpu_custom_call.1} parent=23 // pred_fallthru
          _
        %v158 = vld [vmem:[#allocation2] sm:$0xf]
        %v159 = vld [vmem:[#allocation2 + $0x4] sm:$0xf]
        %v160 = vld [vmem:[%s131] sm:$0xf]
        %v161 = vld [vmem:[%s131 + $0x4] sm:$0xf]
        %v162 = vadd.f32 %v158, %v160
        %v163 = vadd.f32 %v159, %v161
        %164 = vst [vmem:[#allocation2] sm:$0xf] %v162
        %165 = vst [vmem:[#allocation2 + $0x4] sm:$0xf] %v163
        // Predicated region
        $region33: #{tpu_custom_call.1} parent=23 // pred_check
          %p166 = pneg %p152
        $region34: #{tpu_custom_call.1} parent=23 // pred_check_branch
          %168 = sbr.rel (%p166) target = $region36
        $region35: #{tpu_custom_call.1} parent=23 // pred_region
          %v169 = vld [vmem:[#allocation2] sm:$0xf]
          %v170 = vld [vmem:[#allocation2 + $0x4] sm:$0xf]
          %vm171 = vcmask 1043456
          %v172 = vsel %vm171, %v169, 0.0
          %173 = vadd.xlane.f32.xlu0 %v172
          %v174 = vpop.xlane.xlu0 %173
          %v175 = vsel %vm171, %v170, 0.0
          %176 = vadd.xlane.f32.xlu0 %v175
          %v177 = vpop.xlane.xlu0 %176
          %v180 = vlaneseq
          %v181 = vand.u32 %v180, 127
          %v182 = vperm.slane %v174, %v181
          %v183 = vperm.slane %v177, %v181
          %vm184 = vcmask 1041409
          %v185 = vsel %vm184, %v183, %v182
          %vm187 = vcmask 25600
          %188 = vst.msk [vmem:[%s150] sm:$0x3] %vm187, %v185
        $region36: #{tpu_custom_call.1} parent=23 // pred_fallthru
          _
        %s189 = sand.u32 %s66, 1
        %s190 = scalar_lea.sflag [#allocation5], %s189
        %s191 = sand.u32 %s66, 1
        %s192 = smul.addr %s191, 2
        %s193 = scalar_lea.vmem [#allocation6], %s192
        // Predicated region
        $region37: #{tpu_custom_call.1} parent=23 // pred_check
          %p194 = pneg %p76
        $region38: #{tpu_custom_call.1} parent=23 // pred_check_branch
          %196 = sbr.rel (%p194) target = $region40
        $region39: #{tpu_custom_call.1} parent=23 // pred_region
          %198 = vsyncadd %s190, 0
          %s199 = smul.addr %s22, 2
          %s200 = scalar_lea.hbm %s1, %s199
          %s202 = sshll.u32 %s193, 4
          %s203 = int_to_ptr.vmem [resolvable:$true] %s202
          %s204 = sshll.u32 %s200, 4
          %s205 = int_to_ptr.hbm [resolvable:$true] %s204
          %207 = dma.vmem_to_hbm [thread:$0]  %s203, 32, %s205, %s190
        $region40: #{tpu_custom_call.1} parent=23 // pred_fallthru
          _
      $region24: #{tpu_custom_call.1} parent=5 // pred_fallthru
        _
      %p208 = scmp.le.s32.totalorder 2, %s13
      // Predicated region
      $region41: #{tpu_custom_call.1} parent=5 // pred_check
        %p209 = pneg %p208
      $region42: #{tpu_custom_call.1} parent=5 // pred_check_branch
        %211 = sbr.rel (%p209) target = $region44
      $region43: #{tpu_custom_call.1} parent=5 // pred_region
        %s212 = ssub.s32 %s13, 2
        // Predicated region
        $region45: #{tpu_custom_call.1} parent=43 // pred_check
          %p213 = pneg %p82
        $region46: #{tpu_custom_call.1} parent=43 // pred_check_branch
          %215 = sbr.rel (%p213) target = $region48
        $region47: #{tpu_custom_call.1} parent=43 // pred_region
          %s216 = sand.u32 %s67, 1
          %s217 = scalar_lea.sflag [#allocation5], %s216
          %s218 = sand.u32 %s67, 1
          %s219 = smul.addr %s218, 2
          %s220 = scalar_lea.vmem [#allocation6], %s219
          %222 = dma.done %s217, 32
        $region48: #{tpu_custom_call.1} parent=43 // pred_fallthru
          _
      $region44: #{tpu_custom_call.1} parent=5 // pred_fallthru
        _
    $region6: #{tpu_custom_call.1} parent=1 // loop_footer
      %s17 = sadd.s32 1, %s13
    $region7: #{tpu_custom_call.1} parent=1 // loop_footer_branch
      %12 = sbr.rel target = $region3
    $region8: #{tpu_custom_call.1} parent=1 // loop_exit
      _
    %223 = vsyncpa [#allocation4], 1
    %s224 = scalar_lea.sflag [#allocation4], 1
    %225 = vsyncpa %s224, 1
    %226 = vsyncpa [#allocation5], 1
    %s227 = scalar_lea.sflag [#allocation5], 1
    %228 = vsyncpa %s227, 1

</llo_original>
